<compile_context>
chip_gen: v6e
topology: v6e:2x2x1
jax: 0.10.0
libtpu: 0.0.40
codegen_flags: <defaults>
</compile_context>

<pallas_src>
import jax
import jax.numpy as jnp
from jax import lax
from jax.experimental import pallas as pl
from jax.experimental.pallas import tpu as pltpu


def _linspace(start, stop, num):
    """Python mirror of np.linspace(start, stop, num)."""
    if num == 1:
        return [float(start)]
    step = (stop - start) / (num - 1)
    return [float(start + i * step) for i in range(num)]


def _round_up(n, m):
    return ((n + m - 1) // m) * m


def _build_sample_plan(rates):
    """Compile-time plan for the keep-scale accumulator.

    Returns (base_scale, plan, n_words) where plan entries are
    (word_index, bit_shift, uint8_threshold, keep_scale) per stochastic sample.
    The 1/num_samples mean factor is folded into every constant.
    """
    n = len(rates)
    inv_n = 1.0 / float(n)
    n_ident = 0
    stoch = []
    for r in rates:
        if r <= 0.0:
            n_ident += 1               # Dropout(p=0) is the identity
        elif r >= 1.0:
            pass                       # Dropout(p=1) zeroes the sample entirely
        else:
            stoch.append(float(r))
    base_scale = n_ident / float(n)
    plan = []
    for j, r in enumerate(stoch):
        thresh = int(round((1.0 - r) * 256.0))
        thresh = max(0, min(256, thresh))           # keep-prob quantized to 1/256
        plan.append((j // 4, (j % 4) * 8, thresh, inv_n / (1.0 - r)))
    n_words = (len(stoch) + 3) // 4
    return base_scale, plan, n_words


def _make_msd_kernel(base_scale, plan):
    """Build the kernel with thresholds / scales baked in as constants."""

    if not plan:
        # Every sample is deterministic (identity or all-zero): no mask input.
        def kernel(x_ref, w_ref, b_ref, o_ref):
            mean_x = x_ref[...].astype(jnp.float32) * jnp.float32(base_scale)
            out = jnp.dot(mean_x, w_ref[...].astype(jnp.float32),
                          preferred_element_type=jnp.float32)
            o_ref[...] = (out + b_ref[...].astype(jnp.float32)).astype(o_ref.dtype)
        return kernel

    def kernel(bits_ref, x_ref, w_ref, b_ref, o_ref):
        # bits_ref: (n_words, B_TILE, D) uint32   x_ref: (B_TILE, D)
        # w_ref: (D, C_pad)   b_ref: (1, C_pad)   o_ref: (B_TILE, C_pad)
        # Keep-scale accumulator: x is only touched once, at the very end.
        acc_scale = jnp.full(x_ref.shape, jnp.float32(base_scale), jnp.float32)
        for word, shift, thresh, scale in plan:        # static unroll, small
            w32 = bits_ref[word]                        # (B_TILE, D) uint32
            if shift:
                w32 = lax.shift_right_logical(w32, jnp.uint32(shift))
            field = jnp.bitwise_and(w32, jnp.uint32(0xFF))
            keep = field < jnp.uint32(thresh)
            acc_scale = acc_scale + jnp.where(keep, jnp.float32(scale),
                                              jnp.float32(0.0))
        mean_x = x_ref[...].astype(jnp.float32) * acc_scale
        out = jnp.dot(mean_x, w_ref[...].astype(jnp.float32),
                      preferred_element_type=jnp.float32)
        o_ref[...] = (out + b_ref[...].astype(jnp.float32)).astype(o_ref.dtype)

    return kernel


def _pick_b_tile(batch, row_bytes, budget_bytes=40 * 1024 * 1024):
    """Largest sublane-aligned divisor of batch that keeps the per-step streaming
    footprint under budget and yields >=2 grid steps when batch > 8 (so the
    'parallel' axis can shard tiles across v7x's two TensorCores)."""
    if batch <= 8:
        return batch
    cap = max(8, budget_bytes // max(row_bytes, 1))
    limit = min(batch // 2, 512, cap)
    best = None
    for tile in range(8, limit + 1, 8):
        if batch % tile == 0:
            best = tile
    return best if best is not None else batch   # fall back to full batch (grid=1)


def multi_sample_dropout(x, w, b, seed, *, max_dropout_rate, num_samples,
                         b_tile=None):
    """x: (B, D); w: (D, C); b: (1, C); seed: int.  Returns (B, C)."""
    B, D = x.shape
    Dw, C = w.shape
    assert Dw == D and b.shape == (1, C)

    rates = _linspace(0.0, float(max_dropout_rate), int(num_samples))
    base_scale, plan, n_words = _build_sample_plan(rates)
    kernel = _make_msd_kernel(base_scale, plan)

    # Lane-dense output: pad the class dim up to a multiple of 128 so stores are
    # full-width vst (the MXU computes 128 output lanes per pass anyway).
    C_pad = _round_up(max(C, 1), 128)
    w_pad = jnp.zeros((D, C_pad), w.dtype).at[:, :C].set(w)
    b_pad = jnp.zeros((1, C_pad), b.dtype).at[:, :C].set(b)

    x_item = jnp.dtype(x.dtype).itemsize
    # bytes streamed per batch row per step (double-buffered x + bits + out)
    row_bytes = 2 * D * (x_item + 4 * n_words) + 2 * C_pad * x_item
    if b_tile is None:
        b_tile = _pick_b_tile(B, row_bytes)
    assert B % b_tile == 0
    grid = (B // b_tile,)

    # Per-step VMEM footprint estimate (streaming tiles double-buffered + W/b).
    est = (2 * b_tile * D * (x_item + 4 * n_words)
           + 2 * b_tile * C_pad * x_item
           + 2 * D * C_pad * jnp.dtype(w.dtype).itemsize
           + 2 * C_pad * jnp.dtype(b.dtype).itemsize)
    vmem_limit = int(min(64 * 1024 * 1024, max(32 * 1024 * 1024, 2 * est)))

    compiler_params = pltpu.CompilerParams(
        dimension_semantics=("parallel",),        # batch tiles shard across TCs
        vmem_limit_bytes=vmem_limit,
    )
    x_spec = pl.BlockSpec((b_tile, D), lambda i: (i, 0))
    w_spec = pl.BlockSpec((D, C_pad), lambda i: (0, 0))     # weights resident
    b_spec = pl.BlockSpec((1, C_pad), lambda i: (0, 0))     # bias resident
    out_spec = pl.BlockSpec((b_tile, C_pad), lambda i: (i, 0))
    out_shape = jax.ShapeDtypeStruct((B, C_pad), x.dtype)

    if plan:
        # One uint32 word per element carries up to four samples' 8-bit fields.
        bits = jax.random.bits(jax.random.PRNGKey(seed),
                               (n_words, B, D), dtype=jnp.uint32)
        bits_spec = pl.BlockSpec((n_words, b_tile, D), lambda i: (0, i, 0))
        out_pad = pl.pallas_call(
            kernel,
            out_shape=out_shape,
            grid_spec=pltpu.PrefetchScalarGridSpec(
                num_scalar_prefetch=0, grid=grid,
                in_specs=[bits_spec, x_spec, w_spec, b_spec],
                out_specs=out_spec),
            compiler_params=compiler_params,
        )(bits, x, w_pad, b_pad)
    else:
        out_pad = pl.pallas_call(
            kernel,
            out_shape=out_shape,
            grid_spec=pltpu.PrefetchScalarGridSpec(
                num_scalar_prefetch=0, grid=grid,
                in_specs=[x_spec, w_spec, b_spec],
                out_specs=out_spec),
            compiler_params=compiler_params,
        )(x, w_pad, b_pad)

    return out_pad[:, :C]


def reference_msd(x, w, b, rates, bits):
    """Pure-JAX mirror of the kernel math using the same packed random bits."""
    base_scale, plan, _ = _build_sample_plan(rates)
    acc_scale = jnp.full(x.shape, jnp.float32(base_scale), jnp.float32)
    for word, shift, thresh, scale in plan:
        field = jnp.bitwise_and(
            lax.shift_right_logical(bits[word], jnp.uint32(shift)),
            jnp.uint32(0xFF))
        acc_scale = acc_scale + jnp.where(field < jnp.uint32(thresh),
                                          jnp.float32(scale), jnp.float32(0.0))
    return (x.astype(jnp.float32) * acc_scale) @ w.astype(jnp.float32) + b


if __name__ == "__main__":
    key = jax.random.PRNGKey(0)
    B, D, C = 8, 128, 8          # batch, hidden, num_classes (small, vreg-friendly)
    NUM_SAMPLES = 4
    MAX_RATE = 0.5

    kx, kw, kb = jax.random.split(key, 3)
    x = jax.random.normal(kx, (B, D), dtype=jnp.float32)
    # Synthetic "nn.Linear(D, C)" classifier parameters.
    w = jax.random.normal(kw, (D, C), dtype=jnp.float32) * 0.1
    b = jax.random.normal(kb, (1, C), dtype=jnp.float32) * 0.1

    # 1) Deterministic check: max_dropout_rate = 0 -> every sample is the identity,
    #    so the multi-sample mean must equal the plain classifier output.
    out_det = jax.block_until_ready(
        multi_sample_dropout(x, w, b, seed=0,
                             max_dropout_rate=0.0, num_samples=NUM_SAMPLES))
    ref_det = jnp.mean(jnp.stack([x @ w + b for _ in range(NUM_SAMPLES)], 0), 0)
    assert out_det.shape == (B, C)
    assert jnp.allclose(out_det, ref_det, atol=1e-5, rtol=1e-5), (
        f"max err {jnp.max(jnp.abs(out_det - ref_det))}")

    # 2) Stochastic path: training-mode dropout, rates = linspace(0, 0.5, 4).
    out_a = jax.block_until_ready(
        multi_sample_dropout(x, w, b, seed=123,
                             max_dropout_rate=MAX_RATE, num_samples=NUM_SAMPLES))
    out_b = jax.block_until_ready(
        multi_sample_dropout(x, w, b, seed=123,
                             max_dropout_rate=MAX_RATE, num_samples=NUM_SAMPLES))
    assert out_a.shape == (B, C)
    assert bool(jnp.all(jnp.isfinite(out_a)))
    # Same seed -> same bits -> bit-identical result.
    assert bool(jnp.array_equal(out_a, out_b))
    # Dropout actually dropped something (differs from the no-dropout output).
    assert not bool(jnp.allclose(out_a, out_det, atol=1e-6))

    # 3) Exact mirror check against pure JAX using the same packed bits.
    rates = _linspace(0.0, MAX_RATE, NUM_SAMPLES)
    _, _, n_words = _build_sample_plan(rates)
    bits = jax.random.bits(jax.random.PRNGKey(123), (n_words, B, D),
                           dtype=jnp.uint32)
    ref_sto = reference_msd(x, w, b, rates, bits)
    assert jnp.allclose(out_a, ref_sto, atol=2e-4, rtol=2e-4), (
        f"max err {jnp.max(jnp.abs(out_a - ref_sto))}")

    print("KERNEL_OK")
</pallas_src>

<mosaic_0001>
module attributes {stable_mosaic.version = 11 : i64} {
  func.func @kernel(%arg0: i32, %arg1: memref<8x128xf32, #tpu.memory_space<vmem>>, %arg2: memref<128x128xf32, #tpu.memory_space<vmem>>, %arg3: memref<1x128xf32, #tpu.memory_space<vmem>>, %arg4: memref<8x128xf32, #tpu.memory_space<vmem>>) attributes {dimension_semantics = [#tpu.dimension_semantics<parallel>], iteration_bounds = array<i64: 1>, scalar_prefetch = 0 : i64, scratch_operands = 0 : i64, tpu.core_type = #tpu.core_type<tc>, window_params = [{transform_indices = @transform_0, window_bounds = array<i64: 8, 128>}, {pipeline_mode = #tpu.pipeline_mode<synchronous>, transform_indices = @transform_1, window_bounds = array<i64: 128, 128>}, {pipeline_mode = #tpu.pipeline_mode<synchronous>, transform_indices = @transform_2, window_bounds = array<i64: 1, 128>}, {transform_indices = @transform_3, window_bounds = array<i64: 8, 128>}]} {
    %c0 = arith.constant 0 : index
    %c0_0 = arith.constant 0 : index
    %0 = vector.load %arg1[%c0, %c0_0] : memref<8x128xf32, #tpu.memory_space<vmem>>, vector<8x128xf32>
    %cst = arith.constant 1.000000e+00 : f32
    %1 = vector.broadcast %cst : f32 to vector<8x128xf32>
    %2 = arith.mulf %0, %1 : vector<8x128xf32>
    %c0_1 = arith.constant 0 : index
    %c0_2 = arith.constant 0 : index
    %3 = vector.load %arg2[%c0_1, %c0_2] : memref<128x128xf32, #tpu.memory_space<vmem>>, vector<128x128xf32>
    %cst_3 = arith.constant dense<0.000000e+00> : vector<8x128xf32>
    %4 = tpu.matmul %2, %3, %cst_3 {dimension_numbers = #tpu.dot_dimension_numbers<[1], [0], [0], [1], [0, 0, 1, 1], [], []>} : vector<8x128xf32>, vector<128x128xf32>, vector<8x128xf32> -> vector<8x128xf32>
    %c0_4 = arith.constant 0 : index
    %c0_5 = arith.constant 0 : index
    %5 = vector.load %arg3[%c0_4, %c0_5] : memref<1x128xf32, #tpu.memory_space<vmem>>, vector<1x128xf32>
    %6 = vector.broadcast %5 : vector<1x128xf32> to vector<8x128xf32>
    %7 = arith.addf %4, %6 : vector<8x128xf32>
    %c0_6 = arith.constant 0 : index
    %c0_7 = arith.constant 0 : index
    %8 = vector.load %arg4[%c0_6, %c0_7] : memref<8x128xf32, #tpu.memory_space<vmem>>, vector<8x128xf32>
    tpu.vector_store %arg4[%c0_6, %c0_7], %7 {strides = array<i32>} : memref<8x128xf32, #tpu.memory_space<vmem>>, vector<8x128xf32>,
    return
  }
  func.func @transform_0(%arg0: i32) -> (i32, i32) {
    %c0_i32 = arith.constant 0 : i32
    %c0_i32_0 = arith.constant 0 : i32
    return %arg0, %c0_i32 : i32, i32
  }
  func.func @transform_1(%arg0: i32) -> (i32, i32) {
    %c0_i32 = arith.constant 0 : i32
    %c0_i32_0 = arith.constant 0 : i32
    %c0_i32_1 = arith.constant 0 : i32
    return %c0_i32, %c0_i32_0 : i32, i32
  }
  func.func @transform_2(%arg0: i32) -> (i32, i32) {
    %c0_i32 = arith.constant 0 : i32
    %c0_i32_0 = arith.constant 0 : i32
    %c0_i32_1 = arith.constant 0 : i32
    return %c0_i32, %c0_i32_0 : i32, i32
  }
  func.func @transform_3(%arg0: i32) -> (i32, i32) {
    %c0_i32 = arith.constant 0 : i32
    %c0_i32_0 = arith.constant 0 : i32
    return %arg0, %c0_i32 : i32, i32
  }
}

</mosaic_0001>

<llo_original>
// kernel: tpu_custom_call.1
$region0: #{tpu_custom_call.1}
  #allocation0 [shape = 'u32[]', space=smem, size = 0x4, offset = 0x4, fixed_abs, tag = 'smem constant byte address 0x4 - core index']
  #allocation1 [shape = 'u32[144,128]{1,0:T(1,128)}', space=vmem, size = 0x12000, scoped, tag = 'internal scratch']
  %s0 = inlined_call_operand.hbm [shape: f32[8,128], index: 0, kind: input, shape index: {}]
  %s1 = inlined_call_operand.hbm [shape: f32[128,128], index: 1, kind: input, shape index: {}]
  %s2 = inlined_call_operand.vmem [shape: f32[1,128], index: 2, kind: input, shape index: {}]
  %s3 = inlined_call_operand.hbm [shape: f32[8,128], index: 3, kind: output, shape index: {}]
  %s4 = sld [smem:[#allocation0]]
  $region30: #{tpu_custom_call.1} parent=0
    _
  %s6 = ssub.s32 1, %s4
  %s7 = scalar_select 0, %s6, %s4
  $region1: #{tpu_custom_call.1} parent=0
    #allocation2 [shape = 'u8[4096]{0}', space=vmem, size = 0x1000, scoped, tag = 'input window, operand 0, single buffered']
    #allocation3 [shape = 's32[1]{0}', space=sflag, size = 0x4, scoped, tag = 'scoped memory for tpu_custom_call.1']
    #allocation4 [shape = 's32[1]{0}', space=sflag, size = 0x4, scoped, tag = 'scoped memory for tpu_custom_call.1']
    #allocation5 [shape = 'u8[65536]{0}', space=vmem, size = 0x10000, scoped, tag = 'input window, operand 1, single buffered']
    #allocation6 [shape = 's32[1]{0}', space=sflag, size = 0x4, scoped, tag = 'scoped memory for tpu_custom_call.1']
    #allocation7 [shape = 'u8[4096]{0}', space=vmem, size = 0x1000, scoped, tag = 'output window, operand 0, single buffered']
    %8 = vsyncpa [#allocation3], 0
    %9 = vsyncpa [#allocation6], 0
    %10 = vsyncpa [#allocation4], 0
    // Predicated region
    $region2: #{tpu_custom_call.1} parent=1 // pred_check
      _
    $region3: #{tpu_custom_call.1} parent=1 // pred_check_branch
      %12 = sbr.rel (0) target = $region5
    $region4: #{tpu_custom_call.1} parent=1 // pred_region
      %s14 = ssub.s32 128, 128
      %15 = vsyncadd [#allocation3], %s14
      %s17 = sshll.u32 [#allocation2], 4
      %s18 = int_to_ptr.vmem [resolvable:$true] %s17
      %20 = dma.hbm_to_vmem [thread:$0]  %s0, 128, %s18, [#allocation3]
    $region5: #{tpu_custom_call.1} parent=1 // pred_fallthru
      _
    // Predicated region
    $region6: #{tpu_custom_call.1} parent=1 // pred_check
      _
    $region7: #{tpu_custom_call.1} parent=1 // pred_check_branch
      %22 = sbr.rel (0) target = $region9
    $region8: #{tpu_custom_call.1} parent=1 // pred_region
      %s24 = ssub.s32 2048, 2048
      %25 = vsyncadd [#allocation6], %s24
      %s26 = sshll.u32 [#allocation5], 4
      %s27 = int_to_ptr.vmem [resolvable:$true] %s26
      %32 = dma.hbm_to_vmem [thread:$0]  %s1, 2048, %s27, [#allocation6], 128, 128, 8
    $region9: #{tpu_custom_call.1} parent=1 // pred_fallthru
      _
    // Predicated region
    $region10: #{tpu_custom_call.1} parent=1 // pred_check
      _
    $region11: #{tpu_custom_call.1} parent=1 // pred_check_branch
      %34 = sbr.rel (0) target = $region13
    $region12: #{tpu_custom_call.1} parent=1 // pred_region
      _
    $region13: #{tpu_custom_call.1} parent=1 // pred_fallthru
      _
    // Predicated region
    $region14: #{tpu_custom_call.1} parent=1 // pred_check
      _
    $region15: #{tpu_custom_call.1} parent=1 // pred_check_branch
      %36 = sbr.rel (0) target = $region17
    $region16: #{tpu_custom_call.1} parent=1 // pred_region
      %37 = dma.done [#allocation3], 128
    $region17: #{tpu_custom_call.1} parent=1 // pred_fallthru
      _
    // Predicated region
    $region18: #{tpu_custom_call.1} parent=1 // pred_check
      _
    $region19: #{tpu_custom_call.1} parent=1 // pred_check_branch
      %39 = sbr.rel (0) target = $region21
    $region20: #{tpu_custom_call.1} parent=1 // pred_region
      %40 = dma.done [#allocation6], 2048
    $region21: #{tpu_custom_call.1} parent=1 // pred_fallthru
      _
    %v41 = vld [vmem:[#allocation2] sm:$0xff]
    %v42 = vld [vmem:[#allocation5] sm:$0xff]
    %v43 = vld [vmem:[#allocation5 + $0x8] sm:$0xff]
    %v44 = vld [vmem:[#allocation5 + $0x10] sm:$0xff]
    %v45 = vld [vmem:[#allocation5 + $0x18] sm:$0xff]
    %v46 = vld [vmem:[#allocation5 + $0x20] sm:$0xff]
    %v47 = vld [vmem:[#allocation5 + $0x28] sm:$0xff]
    %v48 = vld [vmem:[#allocation5 + $0x30] sm:$0xff]
    %v49 = vld [vmem:[#allocation5 + $0x38] sm:$0xff]
    %v50 = vld [vmem:[#allocation5 + $0x40] sm:$0xff]
    %v51 = vld [vmem:[#allocation5 + $0x48] sm:$0xff]
    %v52 = vld [vmem:[#allocation5 + $0x50] sm:$0xff]
    %v53 = vld [vmem:[#allocation5 + $0x58] sm:$0xff]
    %v54 = vld [vmem:[#allocation5 + $0x60] sm:$0xff]
    %v55 = vld [vmem:[#allocation5 + $0x68] sm:$0xff]
    %v56 = vld [vmem:[#allocation5 + $0x70] sm:$0xff]
    %v57 = vld [vmem:[#allocation5 + $0x78] sm:$0xff]
    %v58 = vld [vmem:[%s2] sm:$0x1]
    %v60 = vlaneseq
    %v61 = vshrl.u32 %v60, 7
    %v62 = vsub.s32 0, %v61
    %v63 = vrot.slane %v58, %v62
    %65 = vmatprep.subr.mxu0 0.0
    %66 = vmatpush1.msra.mxu0 %v57
    %67 = vmatprep.subr.mxu0 0.0
    %68 = vmatpush1.msra.mxu0 %v56
    %69 = vmatprep.subr.mxu0 0.0
    %70 = vmatpush1.msra.mxu0 %v55
    %71 = vmatprep.subr.mxu0 0.0
    %72 = vmatpush1.msra.mxu0 %v54
    %73 = vmatprep.subr.mxu0 0.0
    %74 = vmatpush1.msra.mxu0 %v53
    %75 = vmatprep.subr.mxu0 0.0
    %76 = vmatpush1.msra.mxu0 %v52
    %77 = vmatprep.subr.mxu0 0.0
    %78 = vmatpush1.msra.mxu0 %v51
    %79 = vmatprep.subr.mxu0 0.0
    %80 = vmatpush1.msra.mxu0 %v50
    %81 = vmatprep.subr.mxu0 0.0
    %82 = vmatpush1.msra.mxu0 %v49
    %83 = vmatprep.subr.mxu0 0.0
    %84 = vmatpush1.msra.mxu0 %v48
    %85 = vmatprep.subr.mxu0 0.0
    %86 = vmatpush1.msra.mxu0 %v47
    %87 = vmatprep.subr.mxu0 0.0
    %88 = vmatpush1.msra.mxu0 %v46
    %89 = vmatprep.subr.mxu0 0.0
    %90 = vmatpush1.msra.mxu0 %v45
    %91 = vmatprep.subr.mxu0 0.0
    %92 = vmatpush1.msra.mxu0 %v44
    %93 = vmatprep.subr.mxu0 0.0
    %94 = vmatpush1.msra.mxu0 %v43
    %95 = vmatprep.subr.mxu0 0.0
    %96 = vmatpush1.msra.mxu0 %v42
    %97 = vmatprep.subr.mxu0 0.0
    %98 = vmatpush2.msra.mxu0 0.0
    %99 = vmatprep.subr.mxu0 0.0
    %100 = vmatpush2.msra.mxu0 0.0
    %101 = vmatprep.subr.mxu0 0.0
    %102 = vmatpush2.msra.mxu0 0.0
    %103 = vmatprep.subr.mxu0 0.0
    %104 = vmatpush2.msra.mxu0 0.0
    %105 = vmatprep.subr.mxu0 0.0
    %106 = vmatpush2.msra.mxu0 0.0
    %107 = vmatprep.subr.mxu0 0.0
    %108 = vmatpush2.msra.mxu0 0.0
    %109 = vmatprep.subr.mxu0 0.0
    %110 = vmatpush2.msra.mxu0 0.0
    %111 = vmatprep.subr.mxu0 0.0
    %112 = vmatpush2.msra.mxu0 0.0
    %113 = vmatprep.subr.mxu0 0.0
    %114 = vmatpush2.msra.mxu0 0.0
    %115 = vmatprep.subr.mxu0 0.0
    %116 = vmatpush2.msra.mxu0 0.0
    %117 = vmatprep.subr.mxu0 0.0
    %118 = vmatpush2.msra.mxu0 0.0
    %119 = vmatprep.subr.mxu0 0.0
    %120 = vmatpush2.msra.mxu0 0.0
    %121 = vmatprep.subr.mxu0 0.0
    %122 = vmatpush2.msra.mxu0 0.0
    %123 = vmatprep.subr.mxu0 0.0
    %124 = vmatpush2.msra.mxu0 0.0
    %125 = vmatprep.subr.mxu0 0.0
    %126 = vmatpush2.msra.mxu0 0.0
    %127 = vmatprep.subr.mxu0 0.0
    %128 = vmatpush2.msra.mxu0 0.0
    %129 = vmatprep.mubr.f32.mxu0 0.0
    %130 = vmatmul.mubr.f32.gmra.mxu0 %v41
    %v131 = vpop.f32.mrf.mxu0
    %v132 = vadd.f32 %v63, %v131
    %v133 = vpop.f32.mrf.mxu0
    %134 = vdwg.mxu0
    %135 = vst [vmem:[#allocation7] sm:$0xff] %v132
    // Predicated region
    $region22: #{tpu_custom_call.1} parent=1 // pred_check
      _
    $region23: #{tpu_custom_call.1} parent=1 // pred_check_branch
      %137 = sbr.rel (0) target = $region25
    $region24: #{tpu_custom_call.1} parent=1 // pred_region
      %s139 = ssub.s32 128, 128
      %140 = vsyncadd [#allocation4], %s139
      %s142 = sshll.u32 [#allocation7], 4
      %s143 = int_to_ptr.vmem [resolvable:$true] %s142
      %145 = dma.vmem_to_hbm [thread:$0]  %s143, 128, %s3, [#allocation4]
    $region25: #{tpu_custom_call.1} parent=1 // pred_fallthru
      _
    // Predicated region
    $region26: #{tpu_custom_call.1} parent=1 // pred_check
      _
    $region27: #{tpu_custom_call.1} parent=1 // pred_check_branch
      %147 = sbr.rel (0) target = $region29
    $region28: #{tpu_custom_call.1} parent=1 // pred_region
      %148 = dma.done [#allocation4], 128
    $region29: #{tpu_custom_call.1} parent=1 // pred_fallthru
      _
    %149 = vsyncpa [#allocation3], 1
    %150 = vsyncpa [#allocation6], 1
    %151 = vsyncpa [#allocation4], 1

</llo_original>
